<compile_context>
chip_gen: v6e
topology: v6e:2x2x1
jax: 0.10.0
libtpu: 0.0.40
codegen_flags: <defaults>
</compile_context>

<pallas_src>
import functools

import jax
import jax.numpy as jnp
from jax.experimental import pallas as pl
from jax.experimental.pallas import tpu as pltpu

_LANE = 128
_SUBLANE = 8


def _round_up(n, m):
    return ((n + m - 1) // m) * m


def _vmem_capacity_bytes():
    # v5e / v6e: 128 MiB physical VMEM; v7x: 64 MiB.  Fall back to the conservative
    # 64 MiB if the query is unavailable.
    try:
        cap = getattr(pltpu.get_tpu_info(), "vmem_capacity_bytes", None)
        if cap:
            return int(cap)
    except Exception:
        pass
    return 64 << 20


def _per_row_vmem_bytes(D, H1, H2, itemsize):
    # Per-batch-row VMEM footprint (lane padding to 128 included):
    #   double-buffered x tile + f32 h1/h2/head temporaries + double-buffered
    #   (1, 1, block_b) output rows (8x sublane padding).
    x_row = 2 * _round_up(D, _LANE) * itemsize
    h_row = (_round_up(H1, _LANE) + _round_up(H2, _LANE) + _LANE) * 4
    o_row = 2 * _SUBLANE * 4
    return x_row + h_row + o_row


def _choose_block_b(B, D, H1, H2, itemsize, vmem_cap):
    # Target ~4 MiB of x HBM traffic per grid step (amortizes the ~0.35 us per-step
    # overhead against the DMA) instead of a fixed row count.
    target_x_bytes = 4 << 20
    blk = _round_up(max(target_x_bytes // (D * itemsize), _LANE), _LANE)
    # Clamp by a VMEM budget of ~3/8 of physical capacity (generation-aware); the rest
    # is left for weights, compiler temporaries and slack.
    budget = (vmem_cap * 3) // 8 - (2 << 20)
    per_row = _per_row_vmem_bytes(D, H1, H2, itemsize)
    blk_cap = max(budget // per_row, _LANE) // _LANE * _LANE
    blk = min(blk, blk_cap)
    # Never use a tile larger than the (rounded-up) batch itself.
    blk = min(blk, _round_up(B, _LANE))
    # Keep >= 2 grid steps when the batch allows it, so the "parallel" batch axis can
    # be sharded across v7x's two TensorCores (negligible cost on v5e/v6e).
    if B > 2 * _LANE:
        blk = min(blk, _round_up((B + 1) // 2, _LANE))
    return max(blk, _LANE)


def _vmem_limit_bytes(block_b, D, H1, H2, itemsize, vmem_cap):
    d_pad, h1_pad, h2_pad = (_round_up(v, _LANE) for v in (D, H1, H2))
    weights = (d_pad * h1_pad + h1_pad * h2_pad + 4 * _LANE) * 4
    need = block_b * _per_row_vmem_bytes(D, H1, H2, itemsize) + weights + (4 << 20)
    # 1.5x safety factor on the estimate, floor at 32 MiB, never above 90% of physical.
    return min((vmem_cap * 9) // 10, max(32 << 20, need + need // 2))


def _mlp_kernel(x_ref, w1_ref, b1_ref, w2_ref, b2_ref, w3_ref, b3_ref, o_ref):
    # Layer 1: Linear(D -> H1) + ReLU.   (Dropout = identity in eval mode.)
    h1 = jnp.dot(x_ref[...], w1_ref[...], preferred_element_type=jnp.float32)
    h1 = jnp.maximum(h1 + b1_ref[...], 0.0)
    # Layer 2: Linear(H1 -> H2) + ReLU.  (Dropout = identity in eval mode.)
    h2 = jnp.dot(h1, w2_ref[...], preferred_element_type=jnp.float32)
    h2 = jnp.maximum(h2 + b2_ref[...], 0.0)
    # Head: Linear(H2 -> 1) as a VPU multiply + lane reduce (no wasteful N=1 MXU
    # matmul); b3 comes from SMEM as a scalar; store lane-dense (1, 1, block_b).
    col = jnp.sum(h2 * w3_ref[...], axis=-1) + b3_ref[0, 0]
    o_ref[...] = col.reshape(o_ref.shape).astype(o_ref.dtype)


@functools.partial(jax.jit, static_argnames=("block_b",))
def mlp_baseline_forward(x, params, block_b=None):
    """Fused MLP forward.  x: (B, input_dim) f32 or bf16.  Returns (B,) float32."""
    w1, b1, w2, b2, w3, b3 = params
    B, D = x.shape
    H1 = w1.shape[1]
    H2 = w2.shape[1]
    itemsize = jnp.dtype(x.dtype).itemsize

    vmem_cap = _vmem_capacity_bytes()
    if block_b is None:
        block_b = _choose_block_b(B, D, H1, H2, itemsize, vmem_cap)
    else:
        block_b = _round_up(block_b, _LANE)   # lane-dense output needs multiples of 128
    num_blocks = pl.cdiv(B, block_b)
    vmem_limit = _vmem_limit_bytes(block_b, D, H1, H2, itemsize, vmem_cap)

    # bf16 x stream -> run the first matmul in bf16 (f32 accumulation).  Weights are
    # tiny, so casting w1 here costs nothing; everything downstream stays f32.
    w1 = w1.astype(x.dtype)
    b1 = b1.astype(jnp.float32)
    b2 = b2.astype(jnp.float32)
    w2 = w2.astype(jnp.float32)
    w3_row = w3.reshape(1, H2).astype(jnp.float32)   # (H2, 1) -> (1, H2)
    b3_s = b3.reshape(1, 1).astype(jnp.float32)      # scalar, lives in SMEM

    flops = 2 * B * (D * H1 + H1 * H2 + H2)
    bytes_accessed = (B * D * itemsize + B * 4
                      + D * H1 * itemsize + (H1 * H2 + H1 + H2 + H2 + 1) * 4)

    out = pl.pallas_call(
        _mlp_kernel,
        out_shape=jax.ShapeDtypeStruct((num_blocks, 1, block_b), jnp.float32),
        grid=(num_blocks,),
        in_specs=[
            pl.BlockSpec((block_b, D), lambda i: (i, 0)),        # x streamed over batch
            pl.BlockSpec((D, H1), lambda i: (0, 0)),             # W1 (resident)
            pl.BlockSpec((1, H1), lambda i: (0, 0)),             # b1
            pl.BlockSpec((H1, H2), lambda i: (0, 0)),            # W2
            pl.BlockSpec((1, H2), lambda i: (0, 0)),             # b2
            pl.BlockSpec((1, H2), lambda i: (0, 0)),             # w3 row
            pl.BlockSpec(memory_space=pltpu.MemorySpace.SMEM),   # b3 scalar
        ],
        out_specs=pl.BlockSpec((1, 1, block_b), lambda i: (i, 0, 0)),
        compiler_params=pltpu.CompilerParams(
            dimension_semantics=("parallel",),
            vmem_limit_bytes=int(vmem_limit),
        ),
        cost_estimate=pl.CostEstimate(
            flops=int(flops), transcendentals=0, bytes_accessed=int(bytes_accessed)),
    )(x, w1, b1, w2, b2, w3_row, b3_s)

    # nn.Linear(prev_dim, 1) output is (B, 1); .squeeze() -> (B,).  Rows >= B in the
    # last (partial) block are garbage computed from OOB reads and are sliced off here.
    return out.reshape(-1)[:B]


def init_params(key, input_dim, hidden_dims=(64, 32)):
    """Deterministic init mimicking nn.Linear default (U(-1/sqrt(fan_in), 1/sqrt(fan_in)))."""
    dims = [input_dim] + list(hidden_dims) + [1]
    params = []
    for i in range(len(dims) - 1):
        fan_in, fan_out = dims[i], dims[i + 1]
        key, kw, kb = jax.random.split(key, 3)
        bound = 1.0 / jnp.sqrt(jnp.float32(fan_in))
        w = jax.random.uniform(kw, (fan_in, fan_out), jnp.float32, -bound, bound)
        b = jax.random.uniform(kb, (1, fan_out), jnp.float32, -bound, bound)
        params.extend([w, b])
    return tuple(params)


def _reference_forward(x, params):
    w1, b1, w2, b2, w3, b3 = params
    h1 = jnp.maximum(x @ w1 + b1, 0.0)
    h2 = jnp.maximum(h1 @ w2 + b2, 0.0)
    return jnp.squeeze(h2 @ w3 + b3, axis=-1)


if __name__ == "__main__":
    key = jax.random.PRNGKey(0)
    k_param, k_x = jax.random.split(key)

    input_dim = 16
    hidden_dims = (64, 32)
    params = init_params(k_param, input_dim, hidden_dims)

    # Small batch: single grid step, partial x block (no host-side padding copy).
    x = jax.random.normal(k_x, (2, input_dim), jnp.float32)
    y = jax.block_until_ready(mlp_baseline_forward(x, params))
    y_ref = _reference_forward(x, params)
    assert y.shape == (2,)
    assert jnp.allclose(y, y_ref, atol=1e-5, rtol=1e-4)

    # Ragged batch, multi-step "parallel" grid (300 rows -> 2 blocks of 256).
    x2 = jax.random.normal(jax.random.PRNGKey(1), (300, input_dim), jnp.float32)
    y2 = jax.block_until_ready(mlp_baseline_forward(x2, params))
    y2_ref = _reference_forward(x2, params)
    assert y2.shape == (300,)
    assert jnp.allclose(y2, y2_ref, atol=1e-5, rtol=1e-4)

    # bf16-in-HBM x stream (halves the dominant HBM read); f32 accumulation inside.
    x2_bf16 = x2.astype(jnp.bfloat16)
    y3 = jax.block_until_ready(mlp_baseline_forward(x2_bf16, params))
    y3_ref = _reference_forward(x2_bf16.astype(jnp.float32), params)
    assert y3.shape == (300,)
    assert y3.dtype == jnp.float32
    assert jnp.allclose(y3, y3_ref, atol=5e-2, rtol=5e-2)

    print("KERNEL_OK")
</pallas_src>

<mosaic_0001>
module attributes {stable_mosaic.version = 11 : i64} {
  func.func @_mlp_kernel(%arg0: i32, %arg1: memref<128x16xf32, #tpu.memory_space<vmem>>, %arg2: memref<16x64xf32, #tpu.memory_space<vmem>>, %arg3: memref<1x64xf32, #tpu.memory_space<vmem>>, %arg4: memref<64x32xf32, #tpu.memory_space<vmem>>, %arg5: memref<1x32xf32, #tpu.memory_space<vmem>>, %arg6: memref<1x32xf32, #tpu.memory_space<vmem>>, %arg7: memref<1x1xf32, #tpu.memory_space<smem>>, %arg8: memref<1x1x128xf32, #tpu.memory_space<vmem>>) attributes {dimension_semantics = [#tpu.dimension_semantics<parallel>], iteration_bounds = array<i64: 1>, scalar_prefetch = 0 : i64, scratch_operands = 0 : i64, tpu.core_type = #tpu.core_type<tc>, window_params = [{transform_indices = @transform_0, window_bounds = array<i64: 128, 16>}, {pipeline_mode = #tpu.pipeline_mode<synchronous>, transform_indices = @transform_1, window_bounds = array<i64: 16, 64>}, {pipeline_mode = #tpu.pipeline_mode<synchronous>, transform_indices = @transform_2, window_bounds = array<i64: 1, 64>}, {pipeline_mode = #tpu.pipeline_mode<synchronous>, transform_indices = @transform_3, window_bounds = array<i64: 64, 32>}, {pipeline_mode = #tpu.pipeline_mode<synchronous>, transform_indices = @transform_4, window_bounds = array<i64: 1, 32>}, {pipeline_mode = #tpu.pipeline_mode<synchronous>, transform_indices = @transform_5, window_bounds = array<i64: 1, 32>}, {transform_indices = @transform_6, window_bounds = array<i64: 1, 1>}, {transform_indices = @transform_7, window_bounds = array<i64: 1, 1, 128>}]} {
    %c0 = arith.constant 0 : index
    %c0_0 = arith.constant 0 : index
    %0 = vector.load %arg1[%c0, %c0_0] : memref<128x16xf32, #tpu.memory_space<vmem>>, vector<128x16xf32>
    %c0_1 = arith.constant 0 : index
    %c0_2 = arith.constant 0 : index
    %1 = vector.load %arg2[%c0_1, %c0_2] : memref<16x64xf32, #tpu.memory_space<vmem>>, vector<16x64xf32>
    %cst = arith.constant dense<0.000000e+00> : vector<128x64xf32>
    %2 = tpu.matmul %0, %1, %cst {dimension_numbers = #tpu.dot_dimension_numbers<[1], [0], [0], [1], [0, 0, 1, 1], [], []>} : vector<128x16xf32>, vector<16x64xf32>, vector<128x64xf32> -> vector<128x64xf32>
    %c0_3 = arith.constant 0 : index
    %c0_4 = arith.constant 0 : index
    %3 = vector.load %arg3[%c0_3, %c0_4] : memref<1x64xf32, #tpu.memory_space<vmem>>, vector<1x64xf32>
    %4 = vector.broadcast %3 : vector<1x64xf32> to vector<128x64xf32>
    %5 = arith.addf %2, %4 : vector<128x64xf32>
    %cst_5 = arith.constant 0.000000e+00 : f32
    %6 = vector.broadcast %cst_5 : f32 to vector<128x64xf32>
    %7 = arith.maximumf %5, %6 : vector<128x64xf32>
    %c0_6 = arith.constant 0 : index
    %c0_7 = arith.constant 0 : index
    %8 = vector.load %arg4[%c0_6, %c0_7] : memref<64x32xf32, #tpu.memory_space<vmem>>, vector<64x32xf32>
    %cst_8 = arith.constant dense<0.000000e+00> : vector<128x32xf32>
    %9 = tpu.matmul %7, %8, %cst_8 {dimension_numbers = #tpu.dot_dimension_numbers<[1], [0], [0], [1], [0, 0, 1, 1], [], []>} : vector<128x64xf32>, vector<64x32xf32>, vector<128x32xf32> -> vector<128x32xf32>
    %c0_9 = arith.constant 0 : index
    %c0_10 = arith.constant 0 : index
    %10 = vector.load %arg5[%c0_9, %c0_10] : memref<1x32xf32, #tpu.memory_space<vmem>>, vector<1x32xf32>
    %11 = vector.broadcast %10 : vector<1x32xf32> to vector<128x32xf32>
    %12 = arith.addf %9, %11 : vector<128x32xf32>
    %cst_11 = arith.constant 0.000000e+00 : f32
    %13 = vector.broadcast %cst_11 : f32 to vector<128x32xf32>
    %14 = arith.maximumf %12, %13 : vector<128x32xf32>
    %c0_12 = arith.constant 0 : index
    %c0_13 = arith.constant 0 : index
    %15 = vector.load %arg6[%c0_12, %c0_13] : memref<1x32xf32, #tpu.memory_space<vmem>>, vector<1x32xf32>
    %16 = vector.broadcast %15 : vector<1x32xf32> to vector<128x32xf32>
    %17 = arith.mulf %14, %16 : vector<128x32xf32>
    %cst_14 = arith.constant dense<0.000000e+00> : vector<128xf32>
    %18 = vector.multi_reduction <add>, %17, %cst_14 [1] : vector<128x32xf32> to vector<128xf32>
    %c0_15 = arith.constant 0 : index
    %c0_16 = arith.constant 0 : index
    %19 = memref.load %arg7[%c0_15, %c0_16] : memref<1x1xf32, #tpu.memory_space<smem>>
    %20 = vector.broadcast %19 : f32 to vector<128xf32>
    %21 = arith.addf %18, %20 : vector<128xf32>
    %22 = vector.shape_cast %21 : vector<128xf32> to vector<1x1x128xf32>
    %c0_17 = arith.constant 0 : index
    %c0_18 = arith.constant 0 : index
    %c0_19 = arith.constant 0 : index
    %23 = vector.load %arg8[%c0_17, %c0_18, %c0_19] : memref<1x1x128xf32, #tpu.memory_space<vmem>>, vector<1x1x128xf32>
    tpu.vector_store %arg8[%c0_17, %c0_18, %c0_19], %22 {strides = array<i32>} : memref<1x1x128xf32, #tpu.memory_space<vmem>>, vector<1x1x128xf32>,
    return
  }
  func.func @transform_0(%arg0: i32) -> (i32, i32) {
    %c0_i32 = arith.constant 0 : i32
    %c0_i32_0 = arith.constant 0 : i32
    return %arg0, %c0_i32 : i32, i32
  }
  func.func @transform_1(%arg0: i32) -> (i32, i32) {
    %c0_i32 = arith.constant 0 : i32
    %c0_i32_0 = arith.constant 0 : i32
    %c0_i32_1 = arith.constant 0 : i32
    return %c0_i32, %c0_i32_0 : i32, i32
  }
  func.func @transform_2(%arg0: i32) -> (i32, i32) {
    %c0_i32 = arith.constant 0 : i32
    %c0_i32_0 = arith.constant 0 : i32
    %c0_i32_1 = arith.constant 0 : i32
    return %c0_i32, %c0_i32_0 : i32, i32
  }
  func.func @transform_3(%arg0: i32) -> (i32, i32) {
    %c0_i32 = arith.constant 0 : i32
    %c0_i32_0 = arith.constant 0 : i32
    %c0_i32_1 = arith.constant 0 : i32
    return %c0_i32, %c0_i32_0 : i32, i32
  }
  func.func @transform_4(%arg0: i32) -> (i32, i32) {
    %c0_i32 = arith.constant 0 : i32
    %c0_i32_0 = arith.constant 0 : i32
    %c0_i32_1 = arith.constant 0 : i32
    return %c0_i32, %c0_i32_0 : i32, i32
  }
  func.func @transform_5(%arg0: i32) -> (i32, i32) {
    %c0_i32 = arith.constant 0 : i32
    %c0_i32_0 = arith.constant 0 : i32
    %c0_i32_1 = arith.constant 0 : i32
    return %c0_i32, %c0_i32_0 : i32, i32
  }
  func.func @transform_6(%arg0: i32) -> (i32, i32) {
    %c0_i32 = arith.constant 0 : i32
    %c0_i32_0 = arith.constant 0 : i32
    %c0_i32_1 = arith.constant 0 : i32
    return %c0_i32, %c0_i32_0 : i32, i32
  }
  func.func @transform_7(%arg0: i32) -> (i32, i32, i32) {
    %c0_i32 = arith.constant 0 : i32
    %c0_i32_0 = arith.constant 0 : i32
    %c0_i32_1 = arith.constant 0 : i32
    return %arg0, %c0_i32, %c0_i32_0 : i32, i32, i32
  }
}

</mosaic_0001>

<llo_original>
// kernel: mlp_baseline_forward.1
$region0: #{mlp_baseline_forward.1}
  #allocation0 [shape = 'u32[]', space=smem, size = 0x4, offset = 0x4, fixed_abs, tag = 'smem constant byte address 0x4 - core index']
  #allocation1 [shape = 'u32[144,128]{1,0:T(1,128)}', space=vmem, size = 0x12000, scoped, tag = 'internal scratch']
  #allocation2 [shape = 'f32[1,1]{1,0:T(1,128)S(6)}', space=smem, size = 0x200, scoped, tag = 'scoped memory for mlp_baseline_forward.1']
  %s0 = inlined_call_operand.vmem [shape: f32[2,16], index: 0, kind: input, shape index: {}]
  %s1 = inlined_call_operand.vmem [shape: f32[16,64], index: 1, kind: input, shape index: {}]
  %s2 = inlined_call_operand.vmem [shape: f32[1,64], index: 2, kind: input, shape index: {}]
  %s3 = inlined_call_operand.vmem [shape: f32[64,32], index: 3, kind: input, shape index: {}]
  %s4 = inlined_call_operand.vmem [shape: f32[1,32], index: 4, kind: input, shape index: {}]
  %s5 = inlined_call_operand.vmem [shape: f32[1,32], index: 5, kind: input, shape index: {}]
  %s6 = inlined_call_operand.<no memory space> [shape: f32[1,1], index: 6, kind: input, shape index: {}]
  %s7 = inlined_call_operand.vmem [shape: f32[1,1,128], index: 7, kind: output, shape index: {}]
  %s8 = sld [smem:[#allocation0]]
  $region38: #{mlp_baseline_forward.1} parent=0
    _
  %s10 = ssub.s32 1, %s8
  %s11 = scalar_select 0, %s10, %s8
  %12 = sst [smem:[#allocation2]] %s6
  // Predicated region
  $region2: #{mlp_baseline_forward.1} parent=0 // pred_check
    _
  $region3: #{mlp_baseline_forward.1} parent=0 // pred_check_branch
    %14 = sbr.rel (0) target = $region5
  $region4: #{mlp_baseline_forward.1} parent=0 // pred_region
    _
  $region5: #{mlp_baseline_forward.1} parent=0 // pred_fallthru
    _
  // Predicated region
  $region6: #{mlp_baseline_forward.1} parent=0 // pred_check
    _
  $region7: #{mlp_baseline_forward.1} parent=0 // pred_check_branch
    %16 = sbr.rel (0) target = $region9
  $region8: #{mlp_baseline_forward.1} parent=0 // pred_region
    _
  $region9: #{mlp_baseline_forward.1} parent=0 // pred_fallthru
    _
  // Predicated region
  $region10: #{mlp_baseline_forward.1} parent=0 // pred_check
    _
  $region11: #{mlp_baseline_forward.1} parent=0 // pred_check_branch
    %18 = sbr.rel (0) target = $region13
  $region12: #{mlp_baseline_forward.1} parent=0 // pred_region
    _
  $region13: #{mlp_baseline_forward.1} parent=0 // pred_fallthru
    _
  // Predicated region
  $region14: #{mlp_baseline_forward.1} parent=0 // pred_check
    _
  $region15: #{mlp_baseline_forward.1} parent=0 // pred_check_branch
    %20 = sbr.rel (0) target = $region17
  $region16: #{mlp_baseline_forward.1} parent=0 // pred_region
    _
  $region17: #{mlp_baseline_forward.1} parent=0 // pred_fallthru
    _
  // Predicated region
  $region18: #{mlp_baseline_forward.1} parent=0 // pred_check
    _
  $region19: #{mlp_baseline_forward.1} parent=0 // pred_check_branch
    %22 = sbr.rel (0) target = $region21
  $region20: #{mlp_baseline_forward.1} parent=0 // pred_region
    _
  $region21: #{mlp_baseline_forward.1} parent=0 // pred_fallthru
    _
  // Predicated region
  $region22: #{mlp_baseline_forward.1} parent=0 // pred_check
    _
  $region23: #{mlp_baseline_forward.1} parent=0 // pred_check_branch
    %24 = sbr.rel (0) target = $region25
  $region24: #{mlp_baseline_forward.1} parent=0 // pred_region
    _
  $region25: #{mlp_baseline_forward.1} parent=0 // pred_fallthru
    _
  // Predicated region
  $region26: #{mlp_baseline_forward.1} parent=0 // pred_check
    _
  $region27: #{mlp_baseline_forward.1} parent=0 // pred_check_branch
    %26 = sbr.rel (0) target = $region29
  $region28: #{mlp_baseline_forward.1} parent=0 // pred_region
    _
  $region29: #{mlp_baseline_forward.1} parent=0 // pred_fallthru
    _
  %v27 = vld [vmem:[%s0] sm:$0xff]
  %v28 = vld [vmem:[%s0 + $0x8] sm:$0xff]
  %v29 = vld [vmem:[%s0 + $0x10] sm:$0xff]
  %v30 = vld [vmem:[%s0 + $0x18] sm:$0xff]
  %v31 = vld [vmem:[%s0 + $0x20] sm:$0xff]
  %v32 = vld [vmem:[%s0 + $0x28] sm:$0xff]
  %v33 = vld [vmem:[%s0 + $0x30] sm:$0xff]
  %v34 = vld [vmem:[%s0 + $0x38] sm:$0xff]
  %v35 = vld [vmem:[%s0 + $0x40] sm:$0xff]
  %v36 = vld [vmem:[%s0 + $0x48] sm:$0xff]
  %v37 = vld [vmem:[%s0 + $0x50] sm:$0xff]
  %v38 = vld [vmem:[%s0 + $0x58] sm:$0xff]
  %v39 = vld [vmem:[%s0 + $0x60] sm:$0xff]
  %v40 = vld [vmem:[%s0 + $0x68] sm:$0xff]
  %v41 = vld [vmem:[%s0 + $0x70] sm:$0xff]
  %v42 = vld [vmem:[%s0 + $0x78] sm:$0xff]
  %v43 = vld [vmem:[%s1] sm:$0xff]
  %v44 = vld [vmem:[%s1 + $0x8] sm:$0xff]
  %v45 = vld [vmem:[%s2] sm:$0x1]
  %v47 = vlaneseq
  %v48 = vshrl.u32 %v47, 7
  %v49 = vsub.s32 0, %v48
  %v50 = vrot.slane %v45, %v49
  %vm52 = vcmask 130048
  %v54 = vsel %vm52, %v27, 0
  %v57 = vsel %vm52, %v28, 0
  %v60 = vsel %vm52, %v29, 0
  %v63 = vsel %vm52, %v30, 0
  %v66 = vsel %vm52, %v31, 0
  %v69 = vsel %vm52, %v32, 0
  %v72 = vsel %vm52, %v33, 0
  %v75 = vsel %vm52, %v34, 0
  %v78 = vsel %vm52, %v35, 0
  %v81 = vsel %vm52, %v36, 0
  %v84 = vsel %vm52, %v37, 0
  %v87 = vsel %vm52, %v38, 0
  %v90 = vsel %vm52, %v39, 0
  %v93 = vsel %vm52, %v40, 0
  %v96 = vsel %vm52, %v41, 0
  %v99 = vsel %vm52, %v42, 0
  %101 = vmatprep.subr.mxu0 0.0
  %102 = vmatpush1.msra.mxu0 0.0
  %103 = vmatprep.subr.mxu0 0.0
  %104 = vmatpush1.msra.mxu0 0.0
  %105 = vmatprep.subr.mxu0 0.0
  %106 = vmatpush1.msra.mxu0 0.0
  %107 = vmatprep.subr.mxu0 0.0
  %108 = vmatpush1.msra.mxu0 0.0
  %109 = vmatprep.subr.mxu0 0.0
  %110 = vmatpush1.msra.mxu0 0.0
  %111 = vmatprep.subr.mxu0 0.0
  %112 = vmatpush1.msra.mxu0 0.0
  %113 = vmatprep.subr.mxu0 0.0
  %114 = vmatpush1.msra.mxu0 0.0
  %115 = vmatprep.subr.mxu0 0.0
  %116 = vmatpush1.msra.mxu0 0.0
  %117 = vmatprep.subr.mxu0 0.0
  %118 = vmatpush1.msra.mxu0 0.0
  %119 = vmatprep.subr.mxu0 0.0
  %120 = vmatpush1.msra.mxu0 0.0
  %121 = vmatprep.subr.mxu0 0.0
  %122 = vmatpush1.msra.mxu0 0.0
  %123 = vmatprep.subr.mxu0 0.0
  %124 = vmatpush1.msra.mxu0 0.0
  %125 = vmatprep.subr.mxu0 0.0
  %126 = vmatpush1.msra.mxu0 0.0
  %127 = vmatprep.subr.mxu0 0.0
  %128 = vmatpush1.msra.mxu0 0.0
  %129 = vmatprep.subr.mxu0 0.0
  %130 = vmatpush1.msra.mxu0 %v44
  %131 = vmatprep.subr.mxu0 0.0
  %132 = vmatpush1.msra.mxu0 %v43
  %133 = vmatprep.subr.mxu0 0.0
  %134 = vmatpush2.msra.mxu0 0.0
  %135 = vmatprep.subr.mxu0 0.0
  %136 = vmatpush2.msra.mxu0 0.0
  %137 = vmatprep.subr.mxu0 0.0
  %138 = vmatpush2.msra.mxu0 0.0
  %139 = vmatprep.subr.mxu0 0.0
  %140 = vmatpush2.msra.mxu0 0.0
  %141 = vmatprep.subr.mxu0 0.0
  %142 = vmatpush2.msra.mxu0 0.0
  %143 = vmatprep.subr.mxu0 0.0
  %144 = vmatpush2.msra.mxu0 0.0
  %145 = vmatprep.subr.mxu0 0.0
  %146 = vmatpush2.msra.mxu0 0.0
  %147 = vmatprep.subr.mxu0 0.0
  %148 = vmatpush2.msra.mxu0 0.0
  %149 = vmatprep.subr.mxu0 0.0
  %150 = vmatpush2.msra.mxu0 0.0
  %151 = vmatprep.subr.mxu0 0.0
  %152 = vmatpush2.msra.mxu0 0.0
  %153 = vmatprep.subr.mxu0 0.0
  %154 = vmatpush2.msra.mxu0 0.0
  %155 = vmatprep.subr.mxu0 0.0
  %156 = vmatpush2.msra.mxu0 0.0
  %157 = vmatprep.subr.mxu0 0.0
  %158 = vmatpush2.msra.mxu0 0.0
  %159 = vmatprep.subr.mxu0 0.0
  %160 = vmatpush2.msra.mxu0 0.0
  %161 = vmatprep.subr.mxu0 0.0
  %162 = vmatpush2.msra.mxu0 0.0
  %163 = vmatprep.subr.mxu0 0.0
  %164 = vmatpush2.msra.mxu0 0.0
  %165 = vmatprep.mubr.f32.mxu0 0.0
  %166 = vmatmul.mubr.f32.gmra.mxu0 %v54
  %v167 = vpop.f32.mrf.mxu0
  %v168 = vadd.f32 %v50, %v167
  %v169 = vpop.f32.mrf.mxu0
  %170 = vmatprep.mubr.f32.mxu0 0.0
  %171 = vmatmul.mubr.f32.gmra.mxu0 %v57
  %v172 = vpop.f32.mrf.mxu0
  %v173 = vadd.f32 %v50, %v172
  %v174 = vpop.f32.mrf.mxu0
  %175 = vmatprep.mubr.f32.mxu0 0.0
  %176 = vmatmul.mubr.f32.gmra.mxu0 %v60
  %v177 = vpop.f32.mrf.mxu0
  %v178 = vadd.f32 %v50, %v177
  %v179 = vpop.f32.mrf.mxu0
  %180 = vmatprep.mubr.f32.mxu0 0.0
  %181 = vmatmul.mubr.f32.gmra.mxu0 %v63
  %v182 = vpop.f32.mrf.mxu0
  %v183 = vadd.f32 %v50, %v182
  %v184 = vpop.f32.mrf.mxu0
  %185 = vmatprep.mubr.f32.mxu0 0.0
  %186 = vmatmul.mubr.f32.gmra.mxu0 %v66
  %v187 = vpop.f32.mrf.mxu0
  %v188 = vadd.f32 %v50, %v187
  %v189 = vpop.f32.mrf.mxu0
  %190 = vmatprep.mubr.f32.mxu0 0.0
  %191 = vmatmul.mubr.f32.gmra.mxu0 %v69
  %v192 = vpop.f32.mrf.mxu0
  %v193 = vadd.f32 %v50, %v192
  %v194 = vpop.f32.mrf.mxu0
  %195 = vmatprep.mubr.f32.mxu0 0.0
  %196 = vmatmul.mubr.f32.gmra.mxu0 %v72
  %v197 = vpop.f32.mrf.mxu0
  %v198 = vadd.f32 %v50, %v197
  %v199 = vpop.f32.mrf.mxu0
  %200 = vmatprep.mubr.f32.mxu0 0.0
  %201 = vmatmul.mubr.f32.gmra.mxu0 %v75
  %v202 = vpop.f32.mrf.mxu0
  %v203 = vadd.f32 %v50, %v202
  %v204 = vpop.f32.mrf.mxu0
  %205 = vmatprep.mubr.f32.mxu0 0.0
  %206 = vmatmul.mubr.f32.gmra.mxu0 %v78
  %v207 = vpop.f32.mrf.mxu0
  %v208 = vadd.f32 %v50, %v207
  %v209 = vpop.f32.mrf.mxu0
  %210 = vmatprep.mubr.f32.mxu0 0.0
  %211 = vmatmul.mubr.f32.gmra.mxu0 %v81
  %v212 = vpop.f32.mrf.mxu0
  %v213 = vadd.f32 %v50, %v212
  %v214 = vpop.f32.mrf.mxu0
  %215 = vmatprep.mubr.f32.mxu0 0.0
  %216 = vmatmul.mubr.f32.gmra.mxu0 %v84
  %v217 = vpop.f32.mrf.mxu0
  %v218 = vadd.f32 %v50, %v217
  %v219 = vpop.f32.mrf.mxu0
  %220 = vmatprep.mubr.f32.mxu0 0.0
  %221 = vmatmul.mubr.f32.gmra.mxu0 %v87
  %v222 = vpop.f32.mrf.mxu0
  %v223 = vadd.f32 %v50, %v222
  %v224 = vpop.f32.mrf.mxu0
  %225 = vmatprep.mubr.f32.mxu0 0.0
  %226 = vmatmul.mubr.f32.gmra.mxu0 %v90
  %v227 = vpop.f32.mrf.mxu0
  %v228 = vadd.f32 %v50, %v227
  %v229 = vpop.f32.mrf.mxu0
  %230 = vmatprep.mubr.f32.mxu0 0.0
  %231 = vmatmul.mubr.f32.gmra.mxu0 %v93
  %v232 = vpop.f32.mrf.mxu0
  %v233 = vadd.f32 %v50, %v232
  %v234 = vpop.f32.mrf.mxu0
  %235 = vmatprep.mubr.f32.mxu0 0.0
  %236 = vmatmul.mubr.f32.gmra.mxu0 %v96
  %v237 = vpop.f32.mrf.mxu0
  %v238 = vadd.f32 %v50, %v237
  %v239 = vpop.f32.mrf.mxu0
  %240 = vmatprep.mubr.f32.mxu0 0.0
  %241 = vmatmul.mubr.f32.gmra.mxu0 %v99
  %v242 = vpop.f32.mrf.mxu0
  %v243 = vadd.f32 %v50, %v242
  %v244 = vpop.f32.mrf.mxu0
  %245 = vdwg.mxu0
  %v246 = vmax.f32 %v168, 0.0
  %v247 = vmax.f32 %v173, 0.0
  %v248 = vmax.f32 %v178, 0.0
  %v249 = vmax.f32 %v183, 0.0
  %v250 = vmax.f32 %v188, 0.0
  %v251 = vmax.f32 %v193, 0.0
  %v252 = vmax.f32 %v198, 0.0
  %v253 = vmax.f32 %v203, 0.0
  %v254 = vmax.f32 %v208, 0.0
  %v255 = vmax.f32 %v213, 0.0
  %v256 = vmax.f32 %v218, 0.0
  %v257 = vmax.f32 %v223, 0.0
  %v258 = vmax.f32 %v228, 0.0
  %v259 = vmax.f32 %v233, 0.0
  %v260 = vmax.f32 %v238, 0.0
  %v261 = vmax.f32 %v243, 0.0
  %v262 = vld [vmem:[%s3] sm:$0xff]
  %v263 = vld [vmem:[%s3 + $0x8] sm:$0xff]
  %v264 = vld [vmem:[%s3 + $0x10] sm:$0xff]
  %v265 = vld [vmem:[%s3 + $0x18] sm:$0xff]
  %v266 = vld [vmem:[%s3 + $0x20] sm:$0xff]
  %v267 = vld [vmem:[%s3 + $0x28] sm:$0xff]
  %v268 = vld [vmem:[%s3 + $0x30] sm:$0xff]
  %v269 = vld [vmem:[%s3 + $0x38] sm:$0xff]
  %v270 = vld [vmem:[%s4] sm:$0x1]
  %v272 = vlaneseq
  %v273 = vshrl.u32 %v272, 7
  %v274 = vsub.s32 0, %v273
  %v275 = vrot.slane %v270, %v274
  %vm277 = vcmask 523264
  %v279 = vsel %vm277, %v246, 0
  %v282 = vsel %vm277, %v247, 0
  %v285 = vsel %vm277, %v248, 0
  %v288 = vsel %vm277, %v249, 0
  %v291 = vsel %vm277, %v250, 0
  %v294 = vsel %vm277, %v251, 0
  %v297 = vsel %vm277, %v252, 0
  %v300 = vsel %vm277, %v253, 0
  %v303 = vsel %vm277, %v254, 0
  %v306 = vsel %vm277, %v255, 0
  %v309 = vsel %vm277, %v256, 0
  %v312 = vsel %vm277, %v257, 0
  %v315 = vsel %vm277, %v258, 0
  %v318 = vsel %vm277, %v259, 0
  %v321 = vsel %vm277, %v260, 0
  %v324 = vsel %vm277, %v261, 0
  %326 = vmatprep.subr.mxu0 0.0
  %327 = vmatpush1.msra.mxu0 0.0
  %328 = vmatprep.subr.mxu0 0.0
  %329 = vmatpush1.msra.mxu0 0.0
  %330 = vmatprep.subr.mxu0 0.0
  %331 = vmatpush1.msra.mxu0 0.0
  %332 = vmatprep.subr.mxu0 0.0
  %333 = vmatpush1.msra.mxu0 0.0
  %334 = vmatprep.subr.mxu0 0.0
  %335 = vmatpush1.msra.mxu0 0.0
  %336 = vmatprep.subr.mxu0 0.0
  %337 = vmatpush1.msra.mxu0 0.0
  %338 = vmatprep.subr.mxu0 0.0
  %339 = vmatpush1.msra.mxu0 0.0
  %340 = vmatprep.subr.mxu0 0.0
  %341 = vmatpush1.msra.mxu0 0.0
  %342 = vmatprep.subr.mxu0 0.0
  %343 = vmatpush1.msra.mxu0 %v269
  %344 = vmatprep.subr.mxu0 0.0
  %345 = vmatpush1.msra.mxu0 %v268
  %346 = vmatprep.subr.mxu0 0.0
  %347 = vmatpush1.msra.mxu0 %v267
  %348 = vmatprep.subr.mxu0 0.0
  %349 = vmatpush1.msra.mxu0 %v266
  %350 = vmatprep.subr.mxu0 0.0
  %351 = vmatpush1.msra.mxu0 %v265
  %352 = vmatprep.subr.mxu0 0.0
  %353 = vmatpush1.msra.mxu0 %v264
  %354 = vmatprep.subr.mxu0 0.0
  %355 = vmatpush1.msra.mxu0 %v263
  %356 = vmatprep.subr.mxu0 0.0
  %357 = vmatpush1.msra.mxu0 %v262
  %358 = vmatprep.subr.mxu0 0.0
  %359 = vmatpush2.msra.mxu0 0.0
  %360 = vmatprep.subr.mxu0 0.0
  %361 = vmatpush2.msra.mxu0 0.0
  %362 = vmatprep.subr.mxu0 0.0
  %363 = vmatpush2.msra.mxu0 0.0
  %364 = vmatprep.subr.mxu0 0.0
  %365 = vmatpush2.msra.mxu0 0.0
  %366 = vmatprep.subr.mxu0 0.0
  %367 = vmatpush2.msra.mxu0 0.0
  %368 = vmatprep.subr.mxu0 0.0
  %369 = vmatpush2.msra.mxu0 0.0
  %370 = vmatprep.subr.mxu0 0.0
  %371 = vmatpush2.msra.mxu0 0.0
  %372 = vmatprep.subr.mxu0 0.0
  %373 = vmatpush2.msra.mxu0 0.0
  %374 = vmatprep.subr.mxu0 0.0
  %375 = vmatpush2.msra.mxu0 0.0
  %376 = vmatprep.subr.mxu0 0.0
  %377 = vmatpush2.msra.mxu0 0.0
  %378 = vmatprep.subr.mxu0 0.0
  %379 = vmatpush2.msra.mxu0 0.0
  %380 = vmatprep.subr.mxu0 0.0
  %381 = vmatpush2.msra.mxu0 0.0
  %382 = vmatprep.subr.mxu0 0.0
  %383 = vmatpush2.msra.mxu0 0.0
  %384 = vmatprep.subr.mxu0 0.0
  %385 = vmatpush2.msra.mxu0 0.0
  %386 = vmatprep.subr.mxu0 0.0
  %387 = vmatpush2.msra.mxu0 0.0
  %388 = vmatprep.subr.mxu0 0.0
  %389 = vmatpush2.msra.mxu0 0.0
  %390 = vmatprep.mubr.f32.mxu0 0.0
  %391 = vmatmul.mubr.f32.gmra.mxu0 %v279
  %v392 = vpop.f32.mrf.mxu0
  %v393 = vadd.f32 %v275, %v392
  %v394 = vpop.f32.mrf.mxu0
  %395 = vmatprep.mubr.f32.mxu0 0.0
  %396 = vmatmul.mubr.f32.gmra.mxu0 %v282
  %v397 = vpop.f32.mrf.mxu0
  %v398 = vadd.f32 %v275, %v397
  %v399 = vpop.f32.mrf.mxu0
  %400 = vmatprep.mubr.f32.mxu0 0.0
  %401 = vmatmul.mubr.f32.gmra.mxu0 %v285
  %v402 = vpop.f32.mrf.mxu0
  %v403 = vadd.f32 %v275, %v402
  %v404 = vpop.f32.mrf.mxu0
  %405 = vmatprep.mubr.f32.mxu0 0.0
  %406 = vmatmul.mubr.f32.gmra.mxu0 %v288
  %v407 = vpop.f32.mrf.mxu0
  %v408 = vadd.f32 %v275, %v407
  %v409 = vpop.f32.mrf.mxu0
  %410 = vmatprep.mubr.f32.mxu0 0.0
  %411 = vmatmul.mubr.f32.gmra.mxu0 %v291
  %v412 = vpop.f32.mrf.mxu0
  %v413 = vadd.f32 %v275, %v412
  %v414 = vpop.f32.mrf.mxu0
  %415 = vmatprep.mubr.f32.mxu0 0.0
  %416 = vmatmul.mubr.f32.gmra.mxu0 %v294
  %v417 = vpop.f32.mrf.mxu0
  %v418 = vadd.f32 %v275, %v417
  %v419 = vpop.f32.mrf.mxu0
  %420 = vmatprep.mubr.f32.mxu0 0.0
  %421 = vmatmul.mubr.f32.gmra.mxu0 %v297
  %v422 = vpop.f32.mrf.mxu0
  %v423 = vadd.f32 %v275, %v422
  %v424 = vpop.f32.mrf.mxu0
  %425 = vmatprep.mubr.f32.mxu0 0.0
  %426 = vmatmul.mubr.f32.gmra.mxu0 %v300
  %v427 = vpop.f32.mrf.mxu0
  %v428 = vadd.f32 %v275, %v427
  %v429 = vpop.f32.mrf.mxu0
  %430 = vmatprep.mubr.f32.mxu0 0.0
  %431 = vmatmul.mubr.f32.gmra.mxu0 %v303
  %v432 = vpop.f32.mrf.mxu0
  %v433 = vadd.f32 %v275, %v432
  %v434 = vpop.f32.mrf.mxu0
  %435 = vmatprep.mubr.f32.mxu0 0.0
  %436 = vmatmul.mubr.f32.gmra.mxu0 %v306
  %v437 = vpop.f32.mrf.mxu0
  %v438 = vadd.f32 %v275, %v437
  %v439 = vpop.f32.mrf.mxu0
  %440 = vmatprep.mubr.f32.mxu0 0.0
  %441 = vmatmul.mubr.f32.gmra.mxu0 %v309
  %v442 = vpop.f32.mrf.mxu0
  %v443 = vadd.f32 %v275, %v442
  %v444 = vpop.f32.mrf.mxu0
  %445 = vmatprep.mubr.f32.mxu0 0.0
  %446 = vmatmul.mubr.f32.gmra.mxu0 %v312
  %v447 = vpop.f32.mrf.mxu0
  %v448 = vadd.f32 %v275, %v447
  %v449 = vpop.f32.mrf.mxu0
  %450 = vmatprep.mubr.f32.mxu0 0.0
  %451 = vmatmul.mubr.f32.gmra.mxu0 %v315
  %v452 = vpop.f32.mrf.mxu0
  %v453 = vadd.f32 %v275, %v452
  %v454 = vpop.f32.mrf.mxu0
  %455 = vmatprep.mubr.f32.mxu0 0.0
  %456 = vmatmul.mubr.f32.gmra.mxu0 %v318
  %v457 = vpop.f32.mrf.mxu0
  %v458 = vadd.f32 %v275, %v457
  %v459 = vpop.f32.mrf.mxu0
  %460 = vmatprep.mubr.f32.mxu0 0.0
  %461 = vmatmul.mubr.f32.gmra.mxu0 %v321
  %v462 = vpop.f32.mrf.mxu0
  %v463 = vadd.f32 %v275, %v462
  %v464 = vpop.f32.mrf.mxu0
  %465 = vmatprep.mubr.f32.mxu0 0.0
  %466 = vmatmul.mubr.f32.gmra.mxu0 %v324
  %v467 = vpop.f32.mrf.mxu0
  %v468 = vadd.f32 %v275, %v467
  %v469 = vpop.f32.mrf.mxu0
  %470 = vdwg.mxu0
  %v471 = vmax.f32 %v393, 0.0
  %v472 = vmax.f32 %v398, 0.0
  %v473 = vmax.f32 %v403, 0.0
  %v474 = vmax.f32 %v408, 0.0
  %v475 = vmax.f32 %v413, 0.0
  %v476 = vmax.f32 %v418, 0.0
  %v477 = vmax.f32 %v423, 0.0
  %v478 = vmax.f32 %v428, 0.0
  %v479 = vmax.f32 %v433, 0.0
  %v480 = vmax.f32 %v438, 0.0
  %v481 = vmax.f32 %v443, 0.0
  %v482 = vmax.f32 %v448, 0.0
  %v483 = vmax.f32 %v453, 0.0
  %v484 = vmax.f32 %v458, 0.0
  %v485 = vmax.f32 %v463, 0.0
  %v486 = vmax.f32 %v468, 0.0
  %v487 = vld [vmem:[%s5] sm:$0x1]
  %v489 = vlaneseq
  %v490 = vshrl.u32 %v489, 7
  %v491 = vsub.s32 0, %v490
  %v492 = vrot.slane %v487, %v491
  %v494 = vmul.f32 %v471, %v492
  %v495 = vmul.f32 %v472, %v492
  %v496 = vmul.f32 %v473, %v492
  %v497 = vmul.f32 %v474, %v492
  %v498 = vmul.f32 %v475, %v492
  %v499 = vmul.f32 %v476, %v492
  %v500 = vmul.f32 %v477, %v492
  %v501 = vmul.f32 %v478, %v492
  %v502 = vmul.f32 %v479, %v492
  %v503 = vmul.f32 %v480, %v492
  %v504 = vmul.f32 %v481, %v492
  %v505 = vmul.f32 %v482, %v492
  %v506 = vmul.f32 %v483, %v492
  %v507 = vmul.f32 %v484, %v492
  %v508 = vmul.f32 %v485, %v492
  %v509 = vmul.f32 %v486, %v492
  %vm510 = vcmask 261120
  %v511 = vsel %vm510, %v494, 0.0
  %512 = vadd.xlane.f32.xlu0 %v511
  %v513 = vpop.xlane.xlu0 %512
  %v514 = vsel %vm510, %v495, 0.0
  %515 = vadd.xlane.f32.xlu0 %v514
  %v516 = vpop.xlane.xlu0 %515
  %v517 = vsel %vm510, %v496, 0.0
  %518 = vadd.xlane.f32.xlu0 %v517
  %v519 = vpop.xlane.xlu0 %518
  %v520 = vsel %vm510, %v497, 0.0
  %521 = vadd.xlane.f32.xlu0 %v520
  %v522 = vpop.xlane.xlu0 %521
  %v523 = vsel %vm510, %v498, 0.0
  %524 = vadd.xlane.f32.xlu0 %v523
  %v525 = vpop.xlane.xlu0 %524
  %v526 = vsel %vm510, %v499, 0.0
  %527 = vadd.xlane.f32.xlu0 %v526
  %v528 = vpop.xlane.xlu0 %527
  %v529 = vsel %vm510, %v500, 0.0
  %530 = vadd.xlane.f32.xlu0 %v529
  %v531 = vpop.xlane.xlu0 %530
  %v532 = vsel %vm510, %v501, 0.0
  %533 = vadd.xlane.f32.xlu0 %v532
  %v534 = vpop.xlane.xlu0 %533
  %v535 = vsel %vm510, %v502, 0.0
  %536 = vadd.xlane.f32.xlu0 %v535
  %v537 = vpop.xlane.xlu0 %536
  %v538 = vsel %vm510, %v503, 0.0
  %539 = vadd.xlane.f32.xlu0 %v538
  %v540 = vpop.xlane.xlu0 %539
  %v541 = vsel %vm510, %v504, 0.0
  %542 = vadd.xlane.f32.xlu0 %v541
  %v543 = vpop.xlane.xlu0 %542
  %v544 = vsel %vm510, %v505, 0.0
  %545 = vadd.xlane.f32.xlu0 %v544
  %v546 = vpop.xlane.xlu0 %545
  %v547 = vsel %vm510, %v506, 0.0
  %548 = vadd.xlane.f32.xlu0 %v547
  %v549 = vpop.xlane.xlu0 %548
  %v550 = vsel %vm510, %v507, 0.0
  %551 = vadd.xlane.f32.xlu0 %v550
  %v552 = vpop.xlane.xlu0 %551
  %v553 = vsel %vm510, %v508, 0.0
  %554 = vadd.xlane.f32.xlu0 %v553
  %v555 = vpop.xlane.xlu0 %554
  %v556 = vsel %vm510, %v509, 0.0
  %557 = vadd.xlane.f32.xlu0 %v556
  %v558 = vpop.xlane.xlu0 %557
  %s559 = sld [smem:[#allocation2]]
  %v560 = vstv %s559
  %v561 = vadd.f32 %v513, %v560
  %v562 = vadd.f32 %v516, %v560
  %v563 = vadd.f32 %v519, %v560
  %v564 = vadd.f32 %v522, %v560
  %v565 = vadd.f32 %v525, %v560
  %v566 = vadd.f32 %v528, %v560
  %v567 = vadd.f32 %v531, %v560
  %v568 = vadd.f32 %v534, %v560
  %v569 = vadd.f32 %v537, %v560
  %v570 = vadd.f32 %v540, %v560
  %v571 = vadd.f32 %v543, %v560
  %v572 = vadd.f32 %v546, %v560
  %v573 = vadd.f32 %v549, %v560
  %v574 = vadd.f32 %v552, %v560
  %v575 = vadd.f32 %v555, %v560
  %v576 = vadd.f32 %v558, %v560
  %v593 = vlaneseq
  %v594 = vand.u32 %v593, 127
  %v595 = vlaneseq
  %v596 = vshrl.u32 %v595, 7
  %v597 = vsub.s32 %v594, %v596
  %v598 = vrot.slane %v561, %v597
  %v599 = vadd.s32 %v594, 4294967288
  %v600 = vlaneseq
  %v601 = vshrl.u32 %v600, 7
  %v602 = vsub.s32 %v599, %v601
  %v603 = vrot.slane %v562, %v602
  %vm604 = vcmask 130112
  %v605 = vsel %vm604, %v603, %v598
  %v606 = vadd.s32 %v594, 4294967280
  %v607 = vlaneseq
  %v608 = vshrl.u32 %v607, 7
  %v609 = vsub.s32 %v606, %v608
  %v610 = vrot.slane %v563, %v609
  %vm611 = vcmask 195712
  %v612 = vsel %vm611, %v610, %v605
  %v613 = vadd.s32 %v594, 4294967272
  %v614 = vlaneseq
  %v615 = vshrl.u32 %v614, 7
  %v616 = vsub.s32 %v613, %v615
  %v617 = vrot.slane %v564, %v616
  %vm618 = vcmask 261312
  %v619 = vsel %vm618, %v617, %v612
  %v620 = vadd.s32 %v594, 4294967264
  %v621 = vlaneseq
  %v622 = vshrl.u32 %v621, 7
  %v623 = vsub.s32 %v620, %v622
  %v624 = vrot.slane %v565, %v623
  %vm625 = vcmask 326912
  %v626 = vsel %vm625, %v624, %v619
  %v627 = vadd.s32 %v594, 4294967256
  %v628 = vlaneseq
  %v629 = vshrl.u32 %v628, 7
  %v630 = vsub.s32 %v627, %v629
  %v631 = vrot.slane %v566, %v630
  %vm632 = vcmask 392512
  %v633 = vsel %vm632, %v631, %v626
  %v634 = vadd.s32 %v594, 4294967248
  %v635 = vlaneseq
  %v636 = vshrl.u32 %v635, 7
  %v637 = vsub.s32 %v634, %v636
  %v638 = vrot.slane %v567, %v637
  %vm639 = vcmask 458112
  %v640 = vsel %vm639, %v638, %v633
  %v641 = vadd.s32 %v594, 4294967240
  %v642 = vlaneseq
  %v643 = vshrl.u32 %v642, 7
  %v644 = vsub.s32 %v641, %v643
  %v645 = vrot.slane %v568, %v644
  %vm646 = vcmask 523712
  %v647 = vsel %vm646, %v645, %v640
  %v648 = vadd.s32 %v594, 4294967232
  %v649 = vlaneseq
  %v650 = vshrl.u32 %v649, 7
  %v651 = vsub.s32 %v648, %v650
  %v652 = vrot.slane %v569, %v651
  %vm653 = vcmask 589312
  %v654 = vsel %vm653, %v652, %v647
  %v655 = vadd.s32 %v594, 4294967224
  %v656 = vlaneseq
  %v657 = vshrl.u32 %v656, 7
  %v658 = vsub.s32 %v655, %v657
  %v659 = vrot.slane %v570, %v658
  %vm660 = vcmask 654912
  %v661 = vsel %vm660, %v659, %v654
  %v662 = vadd.s32 %v594, 4294967216
  %v663 = vlaneseq
  %v664 = vshrl.u32 %v663, 7
  %v665 = vsub.s32 %v662, %v664
  %v666 = vrot.slane %v571, %v665
  %vm667 = vcmask 720512
  %v668 = vsel %vm667, %v666, %v661
  %v669 = vadd.s32 %v594, 4294967208
  %v670 = vlaneseq
  %v671 = vshrl.u32 %v670, 7
  %v672 = vsub.s32 %v669, %v671
  %v673 = vrot.slane %v572, %v672
  %vm674 = vcmask 786112
  %v675 = vsel %vm674, %v673, %v668
  %v676 = vadd.s32 %v594, 4294967200
  %v677 = vlaneseq
  %v678 = vshrl.u32 %v677, 7
  %v679 = vsub.s32 %v676, %v678
  %v680 = vrot.slane %v573, %v679
  %vm681 = vcmask 851712
  %v682 = vsel %vm681, %v680, %v675
  %v683 = vadd.s32 %v594, 4294967192
  %v684 = vlaneseq
  %v685 = vshrl.u32 %v684, 7
  %v686 = vsub.s32 %v683, %v685
  %v687 = vrot.slane %v574, %v686
  %vm688 = vcmask 917312
  %v689 = vsel %vm688, %v687, %v682
  %v690 = vadd.s32 %v594, 4294967184
  %v691 = vlaneseq
  %v692 = vshrl.u32 %v691, 7
  %v693 = vsub.s32 %v690, %v692
  %v694 = vrot.slane %v575, %v693
  %vm695 = vcmask 982912
  %v696 = vsel %vm695, %v694, %v689
  %v697 = vadd.s32 %v594, 4294967176
  %v698 = vlaneseq
  %v699 = vshrl.u32 %v698, 7
  %v700 = vsub.s32 %v697, %v699
  %v701 = vrot.slane %v576, %v700
  %vm702 = vcmask 1048512
  %v703 = vsel %vm702, %v701, %v696
  %705 = vst [vmem:[%s7] sm:$0x1] %v703
  // Predicated region
  $region30: #{mlp_baseline_forward.1} parent=0 // pred_check
    _
  $region31: #{mlp_baseline_forward.1} parent=0 // pred_check_branch
    %707 = sbr.rel (0) target = $region33
  $region32: #{mlp_baseline_forward.1} parent=0 // pred_region
    _
  $region33: #{mlp_baseline_forward.1} parent=0 // pred_fallthru
    _
  // Predicated region
  $region34: #{mlp_baseline_forward.1} parent=0 // pred_check
    _
  $region35: #{mlp_baseline_forward.1} parent=0 // pred_check_branch
    %709 = sbr.rel (0) target = $region37
  $region36: #{mlp_baseline_forward.1} parent=0 // pred_region
    _
  $region37: #{mlp_baseline_forward.1} parent=0 // pred_fallthru
    _

</llo_original>
